<compile_context>
chip_gen: v5e
topology: v5e:2x2
jax: 0.10.0
libtpu: 0.0.40
codegen_flags: <defaults>
</compile_context>

<pallas_src>
import functools

import jax
import jax.numpy as jnp
from jax.experimental import pallas as pl
from jax.experimental.pallas import tpu as pltpu


def _se_block_kernel(x_ref, w1t_ref, b1_ref, w2t_ref, b2_ref, o_ref, *,
                     bt, c, hw, channels_last):
    """One grid step: a block of `bt` images, scaled by their SE gates.

    channels_last=False: block is (bt, C, HW)  (HW on lanes).
    channels_last=True : block is (bt, HW, C)  (C on lanes).
    The streamed block stays in its native dtype end-to-end; only the tiny
    gate math ((bt, C) and smaller) is done in f32.
    """
    xb = x_ref[...]                                            # native dtype

    # ---- Squeeze: spatial SUM (1/HW is pre-folded into w1t in the wrapper).
    if channels_last:
        # HW sits on sublanes -> cheap sublane reduction, result already (bt, C)
        # with C lane-dense (no relayout needed for the gate broadcast below).
        y = jnp.sum(xb, axis=1, dtype=jnp.float32)             # (bt, C)
    else:
        # One MXU matmul does every spatial sum in the block at once,
        # accumulating in f32 directly from the native-dtype block.
        ones_col = jnp.ones((hw, 1), dtype=xb.dtype)
        y = jnp.dot(xb.reshape(bt * c, hw), ones_col,
                    preferred_element_type=jnp.float32)        # (bt*C, 1)
        y = y.reshape(bt, c)                                   # tiny relayout

    # ---- Excitation: FC -> ReLU -> FC -> sigmoid, batched over bt rows.
    h = jnp.dot(y, w1t_ref[...],
                preferred_element_type=jnp.float32) + b1_ref[...]   # (bt, hidden)
    h = jnp.maximum(h, 0.0)
    s = jnp.dot(h, w2t_ref[...],
                preferred_element_type=jnp.float32) + b2_ref[...]   # (bt, C)
    s = jax.nn.sigmoid(s)

    # ---- Scale: native-dtype multiply (single packed vmul per vreg on bf16
    # VPUs; Mosaic inserts the upcast automatically on v5e where needed).
    gate = s.astype(o_ref.dtype)
    if channels_last:
        o_ref[...] = xb * gate[:, None, :]
    else:
        o_ref[...] = xb * gate[:, :, None]


def _hw_budgets():
    """Generation-aware (block-size target, scoped-VMEM cap) in bytes."""
    vmem_cap = 64 << 20                      # conservative fallback: v7x per-TC
    try:
        vmem_cap = int(pltpu.get_tpu_info().vmem_capacity_bytes)
    except Exception:
        pass
    if vmem_cap > (64 << 20):                # v5e / v6e: 128 MiB VMEM
        return 8 << 20, 64 << 20             # bigger blocks amortize step cost
    return 4 << 20, 48 << 20                 # v7x: 64 MiB VMEM -> stay modest


def _choose_batch_tile(batch, c, hw, itemsize, target_bytes):
    """Images per grid step: a few MiB per block, but >= 4 grid steps when
    possible so both TensorCores (v7x) get >= 2 steps to pipeline."""
    per_image = max(c * hw * itemsize, 1)
    bt = max(1, min(batch, target_bytes // per_image))
    if batch >= 4:
        bt = max(1, min(bt, batch // 4))
    elif batch >= 2:
        bt = max(1, min(bt, batch // 2))
    while batch % bt:
        bt -= 1
    return bt


def se_block(x_nchw, w1, b1, w2, b2):
    """x_nchw: (B, C, H, W); w1: (C//r, C); b1: (C//r,); w2: (C, C//r); b2: (C,)."""
    B, C, H, W = x_nchw.shape
    HW = H * W
    hidden = w1.shape[0]
    dtype = x_nchw.dtype
    itemsize = x_nchw.dtype.itemsize

    # Layout: keep NCHW's natural (B, C, HW) unless HW is lane-hostile while C
    # is lane-perfect — then go channels-last so output stores are lane-dense.
    channels_last = (HW % 128 != 0) and (C % 128 == 0)
    if channels_last:
        x = x_nchw.reshape(B, C, HW).transpose(0, 2, 1)        # (B, HW, C)
        block_of = lambda n: (n, HW, C)
    else:
        x = x_nchw.reshape(B, C, HW)                            # (B, C, HW)
        block_of = lambda n: (n, C, HW)

    # One-time weight prep: fold 1/HW of the mean into the first FC weight so
    # the kernel feeds a raw sum; weights transposed for row-form gate math.
    w1t = (w1.astype(jnp.float32) / float(HW)).T               # (C, hidden)
    w2t = w2.astype(jnp.float32).T                             # (hidden, C)
    b1r = b1.reshape(1, hidden).astype(jnp.float32)            # (1, hidden)
    b2r = b2.reshape(1, C).astype(jnp.float32)                 # (1, C)

    target_block, vmem_cap = _hw_budgets()
    bt = _choose_batch_tile(B, C, HW, itemsize, target_block)
    grid = (B // bt,)

    block_bytes = bt * C * HW * itemsize
    # 2x double-buffered input + 2x output + weights/temporaries headroom.
    vmem_bytes = int(min(vmem_cap, max(4 * block_bytes + (2 << 20), 16 << 20)))

    cost = pl.CostEstimate(
        flops=2 * B * C * HW              # spatial-sum matmul
        + 4 * B * hidden * C              # two tiny FCs
        + B * C * HW,                     # final scale multiply
        transcendentals=B * C,            # sigmoid
        bytes_accessed=2 * B * C * HW * itemsize,
    )

    kernel = functools.partial(_se_block_kernel, bt=bt, c=C, hw=HW,
                               channels_last=channels_last)

    out = pl.pallas_call(
        kernel,
        out_shape=jax.ShapeDtypeStruct(x.shape, dtype),
        grid_spec=pltpu.PrefetchScalarGridSpec(
            num_scalar_prefetch=0,
            grid=grid,
            in_specs=[
                pl.BlockSpec(block_of(bt), lambda i: (i, 0, 0)),
                pl.BlockSpec((C, hidden), lambda i: (0, 0)),
                pl.BlockSpec((1, hidden), lambda i: (0, 0)),
                pl.BlockSpec((hidden, C), lambda i: (0, 0)),
                pl.BlockSpec((1, C), lambda i: (0, 0)),
            ],
            out_specs=pl.BlockSpec(block_of(bt), lambda i: (i, 0, 0)),
        ),
        compiler_params=pltpu.CompilerParams(
            dimension_semantics=("parallel",),
            vmem_limit_bytes=vmem_bytes,
        ),
        cost_estimate=cost,
    )(x, w1t, b1r, w2t, b2r)

    if channels_last:
        out = out.transpose(0, 2, 1)
    return out.reshape(B, C, H, W)


def se_block_ref(x, w1, b1, w2, b2):
    """Pure-JAX reference mirroring the PyTorch forward."""
    y = jnp.mean(x.astype(jnp.float32), axis=(2, 3))           # (B, C)
    y = jnp.maximum(y @ w1.T + b1, 0.0)                        # (B, C//r)
    y = jax.nn.sigmoid(y @ w2.T + b2)                          # (B, C)
    return (x.astype(jnp.float32) * y[:, :, None, None]).astype(x.dtype)


if __name__ == "__main__":
    key = jax.random.PRNGKey(0)

    def make_params(k, C, reduction):
        hidden = C // reduction
        k1, k2, k3, k4 = jax.random.split(k, 4)
        bound1 = 1.0 / (C ** 0.5)
        w1 = jax.random.uniform(k1, (hidden, C), minval=-bound1, maxval=bound1,
                                dtype=jnp.float32)
        b1 = jax.random.uniform(k2, (hidden,), minval=-bound1, maxval=bound1,
                                dtype=jnp.float32)
        bound2 = 1.0 / (hidden ** 0.5)
        w2 = jax.random.uniform(k3, (C, hidden), minval=-bound2, maxval=bound2,
                                dtype=jnp.float32)
        b2 = jax.random.uniform(k4, (C,), minval=-bound2, maxval=bound2,
                                dtype=jnp.float32)
        return w1, b1, w2, b2

    # Case 1: f32, lane-aligned spatial (HW = 256) -> channels-first path.
    kx, kp, key = jax.random.split(key, 3)
    B, C, H, W = 2, 32, 16, 16
    x = jax.random.normal(kx, (B, C, H, W), dtype=jnp.float32)
    w1, b1, w2, b2 = make_params(kp, C, reduction=16)
    out = se_block(x, w1, b1, w2, b2)
    jax.block_until_ready(out)
    ref = se_block_ref(x, w1, b1, w2, b2)
    assert out.shape == x.shape and out.dtype == x.dtype
    assert jnp.allclose(out, ref, atol=1e-5, rtol=1e-5)

    # Case 2: bf16 stream (native-dtype DMA + native-dtype scale path).
    kx, kp, key = jax.random.split(key, 3)
    B, C, H, W = 4, 32, 16, 16
    xb = jax.random.normal(kx, (B, C, H, W), dtype=jnp.float32).astype(jnp.bfloat16)
    w1, b1, w2, b2 = make_params(kp, C, reduction=16)
    outb = se_block(xb, w1, b1, w2, b2)
    jax.block_until_ready(outb)
    refb = se_block_ref(xb, w1, b1, w2, b2)
    assert outb.shape == xb.shape and outb.dtype == jnp.bfloat16
    assert jnp.allclose(outb.astype(jnp.float32), refb.astype(jnp.float32),
                        atol=5e-2, rtol=5e-2)

    # Case 3: production-style shape (HW = 49, C = 128) -> channels-last path.
    kx, kp, key = jax.random.split(key, 3)
    B, C, H, W = 2, 128, 7, 7
    xc = jax.random.normal(kx, (B, C, H, W), dtype=jnp.float32)
    w1, b1, w2, b2 = make_params(kp, C, reduction=16)
    outc = se_block(xc, w1, b1, w2, b2)
    jax.block_until_ready(outc)
    refc = se_block_ref(xc, w1, b1, w2, b2)
    assert outc.shape == xc.shape and outc.dtype == xc.dtype
    assert jnp.allclose(outc, refc, atol=1e-5, rtol=1e-5)

    print("KERNEL_OK")
</pallas_src>

<mosaic_0001>
module attributes {stable_mosaic.version = 11 : i64} {
  func.func @_se_block_kernel(%arg0: i32, %arg1: memref<1x32x256xf32, #tpu.memory_space<vmem>>, %arg2: memref<32x2xf32, #tpu.memory_space<vmem>>, %arg3: memref<1x2xf32, #tpu.memory_space<vmem>>, %arg4: memref<2x32xf32, #tpu.memory_space<vmem>>, %arg5: memref<1x32xf32, #tpu.memory_space<vmem>>, %arg6: memref<1x32x256xf32, #tpu.memory_space<vmem>>) attributes {dimension_semantics = [#tpu.dimension_semantics<parallel>], iteration_bounds = array<i64: 2>, scalar_prefetch = 0 : i64, scratch_operands = 0 : i64, tpu.core_type = #tpu.core_type<tc>, window_params = [{transform_indices = @transform_0, window_bounds = array<i64: 1, 32, 256>}, {pipeline_mode = #tpu.pipeline_mode<synchronous>, transform_indices = @transform_1, window_bounds = array<i64: 32, 2>}, {pipeline_mode = #tpu.pipeline_mode<synchronous>, transform_indices = @transform_2, window_bounds = array<i64: 1, 2>}, {pipeline_mode = #tpu.pipeline_mode<synchronous>, transform_indices = @transform_3, window_bounds = array<i64: 2, 32>}, {pipeline_mode = #tpu.pipeline_mode<synchronous>, transform_indices = @transform_4, window_bounds = array<i64: 1, 32>}, {transform_indices = @transform_5, window_bounds = array<i64: 1, 32, 256>}]} {
    %c0 = arith.constant 0 : index
    %c0_0 = arith.constant 0 : index
    %c0_1 = arith.constant 0 : index
    %0 = vector.load %arg1[%c0, %c0_0, %c0_1] : memref<1x32x256xf32, #tpu.memory_space<vmem>>, vector<1x32x256xf32>
    %cst = arith.constant 1.000000e+00 : f32
    %1 = vector.broadcast %cst : f32 to vector<256x1xf32>
    %2 = vector.shape_cast %0 : vector<1x32x256xf32> to vector<32x256xf32>
    %cst_2 = arith.constant dense<0.000000e+00> : vector<32x1xf32>
    %3 = tpu.matmul %2, %1, %cst_2 {dimension_numbers = #tpu.dot_dimension_numbers<[1], [0], [0], [1], [0, 0, 1, 1], [], []>} : vector<32x256xf32>, vector<256x1xf32>, vector<32x1xf32> -> vector<32x1xf32>
    %4 = vector.shape_cast %3 : vector<32x1xf32> to vector<1x32xf32>
    %c0_3 = arith.constant 0 : index
    %c0_4 = arith.constant 0 : index
    %5 = vector.load %arg2[%c0_3, %c0_4] : memref<32x2xf32, #tpu.memory_space<vmem>>, vector<32x2xf32>
    %cst_5 = arith.constant dense<0.000000e+00> : vector<1x2xf32>
    %6 = tpu.matmul %4, %5, %cst_5 {dimension_numbers = #tpu.dot_dimension_numbers<[1], [0], [0], [1], [0, 0, 1, 1], [], []>} : vector<1x32xf32>, vector<32x2xf32>, vector<1x2xf32> -> vector<1x2xf32>
    %c0_6 = arith.constant 0 : index
    %c0_7 = arith.constant 0 : index
    %7 = vector.load %arg3[%c0_6, %c0_7] : memref<1x2xf32, #tpu.memory_space<vmem>>, vector<1x2xf32>
    %8 = arith.addf %6, %7 : vector<1x2xf32>
    %cst_8 = arith.constant 0.000000e+00 : f32
    %9 = vector.broadcast %cst_8 : f32 to vector<1x2xf32>
    %10 = arith.maximumf %8, %9 : vector<1x2xf32>
    %c0_9 = arith.constant 0 : index
    %c0_10 = arith.constant 0 : index
    %11 = vector.load %arg4[%c0_9, %c0_10] : memref<2x32xf32, #tpu.memory_space<vmem>>, vector<2x32xf32>
    %cst_11 = arith.constant dense<0.000000e+00> : vector<1x32xf32>
    %12 = tpu.matmul %10, %11, %cst_11 {dimension_numbers = #tpu.dot_dimension_numbers<[1], [0], [0], [1], [0, 0, 1, 1], [], []>} : vector<1x2xf32>, vector<2x32xf32>, vector<1x32xf32> -> vector<1x32xf32>
    %c0_12 = arith.constant 0 : index
    %c0_13 = arith.constant 0 : index
    %13 = vector.load %arg5[%c0_12, %c0_13] : memref<1x32xf32, #tpu.memory_space<vmem>>, vector<1x32xf32>
    %14 = arith.addf %12, %13 : vector<1x32xf32>
    %15 = arith.negf %14 : vector<1x32xf32>
    %16 = math.exp %15 : vector<1x32xf32>
    %cst_14 = arith.constant 1.000000e+00 : f32
    %17 = vector.broadcast %cst_14 : f32 to vector<1x32xf32>
    %18 = arith.addf %17, %16 : vector<1x32xf32>
    %19 = arith.divf %17, %18 : vector<1x32xf32>
    %20 = vector.shape_cast %19 : vector<1x32xf32> to vector<1x32x1xf32>
    %21 = vector.broadcast %20 : vector<1x32x1xf32> to vector<1x32x256xf32>
    %22 = arith.mulf %0, %21 : vector<1x32x256xf32>
    %c0_15 = arith.constant 0 : index
    %c0_16 = arith.constant 0 : index
    %c0_17 = arith.constant 0 : index
    %23 = vector.load %arg6[%c0_15, %c0_16, %c0_17] : memref<1x32x256xf32, #tpu.memory_space<vmem>>, vector<1x32x256xf32>
    tpu.vector_store %arg6[%c0_15, %c0_16, %c0_17], %22 {strides = array<i32>} : memref<1x32x256xf32, #tpu.memory_space<vmem>>, vector<1x32x256xf32>,
    return
  }
  func.func @transform_0(%arg0: i32) -> (i32, i32, i32) {
    %c0_i32 = arith.constant 0 : i32
    %c0_i32_0 = arith.constant 0 : i32
    %c0_i32_1 = arith.constant 0 : i32
    return %arg0, %c0_i32, %c0_i32_0 : i32, i32, i32
  }
  func.func @transform_1(%arg0: i32) -> (i32, i32) {
    %c0_i32 = arith.constant 0 : i32
    %c0_i32_0 = arith.constant 0 : i32
    %c0_i32_1 = arith.constant 0 : i32
    return %c0_i32, %c0_i32_0 : i32, i32
  }
  func.func @transform_2(%arg0: i32) -> (i32, i32) {
    %c0_i32 = arith.constant 0 : i32
    %c0_i32_0 = arith.constant 0 : i32
    %c0_i32_1 = arith.constant 0 : i32
    return %c0_i32, %c0_i32_0 : i32, i32
  }
  func.func @transform_3(%arg0: i32) -> (i32, i32) {
    %c0_i32 = arith.constant 0 : i32
    %c0_i32_0 = arith.constant 0 : i32
    %c0_i32_1 = arith.constant 0 : i32
    return %c0_i32, %c0_i32_0 : i32, i32
  }
  func.func @transform_4(%arg0: i32) -> (i32, i32) {
    %c0_i32 = arith.constant 0 : i32
    %c0_i32_0 = arith.constant 0 : i32
    %c0_i32_1 = arith.constant 0 : i32
    return %c0_i32, %c0_i32_0 : i32, i32
  }
  func.func @transform_5(%arg0: i32) -> (i32, i32, i32) {
    %c0_i32 = arith.constant 0 : i32
    %c0_i32_0 = arith.constant 0 : i32
    %c0_i32_1 = arith.constant 0 : i32
    return %arg0, %c0_i32, %c0_i32_0 : i32, i32, i32
  }
}

</mosaic_0001>

<llo_original>
// kernel: tpu_custom_call.1
$region0: #{tpu_custom_call.1}
  #allocation0 [shape = 'u32[]', space=smem, size = 0x4, offset = 0x4, fixed_abs, tag = 'smem constant byte address 0x4 - core index']
  #allocation1 [shape = 'u32[72,128]{1,0:T(1,128)}', space=vmem, size = 0x9000, scoped, tag = 'internal scratch']
  %s0 = inlined_call_operand.hbm [shape: f32[2,32,256], index: 0, kind: input, shape index: {}]
  %s1 = inlined_call_operand.vmem [shape: f32[32,2], index: 1, kind: input, shape index: {}]
  %s2 = inlined_call_operand.vmem [shape: f32[1,2], index: 2, kind: input, shape index: {}]
  %s3 = inlined_call_operand.vmem [shape: f32[2,32], index: 3, kind: input, shape index: {}]
  %s4 = inlined_call_operand.vmem [shape: f32[1,32], index: 4, kind: input, shape index: {}]
  %s5 = inlined_call_operand.hbm [shape: f32[2,32,256], index: 5, kind: output, shape index: {}]
  %s6 = sld [smem:[#allocation0]]
  $region57: #{tpu_custom_call.1} parent=0
    _
  %s8 = ssub.s32 1, %s6
  %s9 = scalar_select 0, %s8, %s6
  $region1: #{tpu_custom_call.1} parent=0
    #allocation2 [shape = 'u8[65536]{0}', space=vmem, size = 0x10000, scoped, tag = 'input window, operand 0']
    #allocation3 [shape = 's32[2]{0}', space=sflag, size = 0x8, scoped, tag = 'scoped memory for tpu_custom_call.1']
    #allocation4 [shape = 's32[2]{0}', space=sflag, size = 0x8, scoped, tag = 'scoped memory for tpu_custom_call.1']
    #allocation5 [shape = 'u8[65536]{0}', space=vmem, size = 0x10000, scoped, tag = 'output window, operand 0']
    %10 = vsyncpa [#allocation3], 0
    %s11 = scalar_lea.sflag [#allocation3], 1
    %12 = vsyncpa %s11, 0
    %13 = vsyncpa [#allocation4], 0
    %s14 = scalar_lea.sflag [#allocation4], 1
    %15 = vsyncpa %s14, 0
    loop: start=0, step=1, limit=4
    $region2: #{tpu_custom_call.1} parent=1 // loop_pre_header
      _
    $region3: #{tpu_custom_call.1} parent=1 // loop_header
      %s17 = sphi 0, %s21
      %p18 = scmp.ge.s32.totalorder %s17, 4
      %s27 = sphi 0, %s29
      %s30 = sphi 0, %s27
      %s31 = sphi 0, %s30
      %s47 = sphi 0, %s31
      %s51 = sphi 0, %s51
      %s53 = sphi 0, %s51
      %s54 = sphi 0, %s53
      %s68 = sphi 0, %s54
      %s72 = sphi 0, %s72
      %s74 = sphi 0, %s72
      %s75 = sphi 0, %s74
      %s89 = sphi 0, %s75
      %s93 = sphi 0, %s93
      %s95 = sphi 0, %s93
      %s96 = sphi 0, %s95
      %s110 = sphi 0, %s96
      %s114 = sphi 0, %s114
      %s116 = sphi 0, %s114
      %s117 = sphi 0, %s116
      %s131 = sphi 0, %s117
      %s137 = sphi 0, %s139
      %s140 = sphi 0, %s137
      %s141 = sphi 0, %s140
      %s157 = sphi 0, %s141
    $region4: #{tpu_custom_call.1} parent=1 // loop_header_branch
      %20 = sbr.rel (%p18) target = $region8
    $region5: #{tpu_custom_call.1} parent=1 // loop_body
      %s22 = ssub.s32 %s17, 1
      %s23 = ssub.s32 %s17, 2
      %s24 = sadd.s32 %s17, 1
      %s25 = ssub.s32 %s17, %s24
      %p26 = scmp.eq.s32.totalorder %s25, 0
      %s28 = sadd.s32 %s27, 1
      %s29 = scalar_select %p26, %s27, %s28
      %p32 = pneg %p26
      %p33 = scmp.eq.s32.totalorder %s17, 1
      %p34 = por %p32, %p33
      %p35 = scmp.ne.s32.totalorder %s27, %s30
      %p36 = scmp.eq.s32.totalorder %s17, 0
      %p37 = por %p35, %p36
      %p38 = scmp.ne.s32.totalorder %s27, %s30
      %p39 = scmp.eq.s32.totalorder %s22, 1
      %p40 = por %p38, %p39
      %p41 = scmp.ne.s32.totalorder %s30, %s31
      %p42 = scmp.eq.s32.totalorder %s22, 0
      %p43 = por %p41, %p42
      %p44 = scmp.ne.s32.totalorder %s30, %s31
      %p45 = scmp.eq.s32.totalorder %s23, 1
      %p46 = por %p44, %p45
      %p48 = scmp.ne.s32.totalorder %s31, %s47
      %p49 = scmp.eq.s32.totalorder %s23, 0
      %p50 = por %p48, %p49
      %s52 = sadd.s32 %s51, 1
      %p55 = scmp.eq.s32.totalorder %s17, 1
      %p56 = scmp.ne.s32.totalorder %s51, %s53
      %p57 = scmp.eq.s32.totalorder %s17, 0
      %p58 = por %p56, %p57
      %p59 = scmp.ne.s32.totalorder %s51, %s53
      %p60 = scmp.eq.s32.totalorder %s22, 1
      %p61 = por %p59, %p60
      %p62 = scmp.ne.s32.totalorder %s53, %s54
      %p63 = scmp.eq.s32.totalorder %s22, 0
      %p64 = por %p62, %p63
      %p65 = scmp.ne.s32.totalorder %s53, %s54
      %p66 = scmp.eq.s32.totalorder %s23, 1
      %p67 = por %p65, %p66
      %p69 = scmp.ne.s32.totalorder %s54, %s68
      %p70 = scmp.eq.s32.totalorder %s23, 0
      %p71 = por %p69, %p70
      %s73 = sadd.s32 %s72, 1
      %p76 = scmp.eq.s32.totalorder %s17, 1
      %p77 = scmp.ne.s32.totalorder %s72, %s74
      %p78 = scmp.eq.s32.totalorder %s17, 0
      %p79 = por %p77, %p78
      %p80 = scmp.ne.s32.totalorder %s72, %s74
      %p81 = scmp.eq.s32.totalorder %s22, 1
      %p82 = por %p80, %p81
      %p83 = scmp.ne.s32.totalorder %s74, %s75
      %p84 = scmp.eq.s32.totalorder %s22, 0
      %p85 = por %p83, %p84
      %p86 = scmp.ne.s32.totalorder %s74, %s75
      %p87 = scmp.eq.s32.totalorder %s23, 1
      %p88 = por %p86, %p87
      %p90 = scmp.ne.s32.totalorder %s75, %s89
      %p91 = scmp.eq.s32.totalorder %s23, 0
      %p92 = por %p90, %p91
      %s94 = sadd.s32 %s93, 1
      %p97 = scmp.eq.s32.totalorder %s17, 1
      %p98 = scmp.ne.s32.totalorder %s93, %s95
      %p99 = scmp.eq.s32.totalorder %s17, 0
      %p100 = por %p98, %p99
      %p101 = scmp.ne.s32.totalorder %s93, %s95
      %p102 = scmp.eq.s32.totalorder %s22, 1
      %p103 = por %p101, %p102
      %p104 = scmp.ne.s32.totalorder %s95, %s96
      %p105 = scmp.eq.s32.totalorder %s22, 0
      %p106 = por %p104, %p105
      %p107 = scmp.ne.s32.totalorder %s95, %s96
      %p108 = scmp.eq.s32.totalorder %s23, 1
      %p109 = por %p107, %p108
      %p111 = scmp.ne.s32.totalorder %s96, %s110
      %p112 = scmp.eq.s32.totalorder %s23, 0
      %p113 = por %p111, %p112
      %s115 = sadd.s32 %s114, 1
      %p118 = scmp.eq.s32.totalorder %s17, 1
      %p119 = scmp.ne.s32.totalorder %s114, %s116
      %p120 = scmp.eq.s32.totalorder %s17, 0
      %p121 = por %p119, %p120
      %p122 = scmp.ne.s32.totalorder %s114, %s116
      %p123 = scmp.eq.s32.totalorder %s22, 1
      %p124 = por %p122, %p123
      %p125 = scmp.ne.s32.totalorder %s116, %s117
      %p126 = scmp.eq.s32.totalorder %s22, 0
      %p127 = por %p125, %p126
      %p128 = scmp.ne.s32.totalorder %s116, %s117
      %p129 = scmp.eq.s32.totalorder %s23, 1
      %p130 = por %p128, %p129
      %p132 = scmp.ne.s32.totalorder %s117, %s131
      %p133 = scmp.eq.s32.totalorder %s23, 0
      %p134 = por %p132, %p133
      %s135 = ssub.s32 %s17, %s24
      %p136 = scmp.eq.s32.totalorder %s135, 0
      %s138 = sadd.s32 %s137, 1
      %s139 = scalar_select %p136, %s137, %s138
      %p142 = pneg %p136
      %p143 = scmp.eq.s32.totalorder %s17, 1
      %p144 = por %p142, %p143
      %p145 = scmp.ne.s32.totalorder %s137, %s140
      %p146 = scmp.eq.s32.totalorder %s17, 0
      %p147 = por %p145, %p146
      %p148 = scmp.ne.s32.totalorder %s137, %s140
      %p149 = scmp.eq.s32.totalorder %s22, 1
      %p150 = por %p148, %p149
      %p151 = scmp.ne.s32.totalorder %s140, %s141
      %p152 = scmp.eq.s32.totalorder %s22, 0
      %p153 = por %p151, %p152
      %p154 = scmp.ne.s32.totalorder %s140, %s141
      %p155 = scmp.eq.s32.totalorder %s23, 1
      %p156 = por %p154, %p155
      %p158 = scmp.ne.s32.totalorder %s141, %s157
      %p159 = scmp.eq.s32.totalorder %s23, 0
      %p160 = por %p158, %p159
      %p161 = scmp.le.s32.totalorder 1, %s17
      %p162 = scmp.lt.s32.totalorder %s17, 3
      %p163 = pnand %p161, %p162
      %p164 = pneg %p163
      // Predicated region
      $region9: #{tpu_custom_call.1} parent=5 // pred_check
        _
      $region10: #{tpu_custom_call.1} parent=5 // pred_check_branch
        %166 = sbr.rel (%p163) target = $region12
      $region11: #{tpu_custom_call.1} parent=5 // pred_region
        %s167 = ssub.s32 %s17, 1
        // Predicated region
        $region13: #{tpu_custom_call.1} parent=11 // pred_check
          %p168 = pneg %p64
        $region14: #{tpu_custom_call.1} parent=11 // pred_check_branch
          %170 = sbr.rel (%p168) target = $region16
        $region15: #{tpu_custom_call.1} parent=11 // pred_region
          _
        $region16: #{tpu_custom_call.1} parent=11 // pred_fallthru
          _
        // Predicated region
        $region17: #{tpu_custom_call.1} parent=11 // pred_check
          %p171 = pneg %p85
        $region18: #{tpu_custom_call.1} parent=11 // pred_check_branch
          %173 = sbr.rel (%p171) target = $region20
        $region19: #{tpu_custom_call.1} parent=11 // pred_region
          _
        $region20: #{tpu_custom_call.1} parent=11 // pred_fallthru
          _
        // Predicated region
        $region21: #{tpu_custom_call.1} parent=11 // pred_check
          %p174 = pneg %p106
        $region22: #{tpu_custom_call.1} parent=11 // pred_check_branch
          %176 = sbr.rel (%p174) target = $region24
        $region23: #{tpu_custom_call.1} parent=11 // pred_region
          _
        $region24: #{tpu_custom_call.1} parent=11 // pred_fallthru
          _
        // Predicated region
        $region25: #{tpu_custom_call.1} parent=11 // pred_check
          %p177 = pneg %p127
        $region26: #{tpu_custom_call.1} parent=11 // pred_check_branch
          %179 = sbr.rel (%p177) target = $region28
        $region27: #{tpu_custom_call.1} parent=11 // pred_region
          _
        $region28: #{tpu_custom_call.1} parent=11 // pred_fallthru
          _
      $region12: #{tpu_custom_call.1} parent=5 // pred_fallthru
        _
      %p180 = scmp.lt.s32.totalorder %s17, 2
      // Predicated region
      $region29: #{tpu_custom_call.1} parent=5 // pred_check
        %p181 = pneg %p180
      $region30: #{tpu_custom_call.1} parent=5 // pred_check_branch
        %183 = sbr.rel (%p181) target = $region32
      $region31: #{tpu_custom_call.1} parent=5 // pred_region
        // Predicated region
        $region33: #{tpu_custom_call.1} parent=31 // pred_check
          %p184 = pneg %p37
        $region34: #{tpu_custom_call.1} parent=31 // pred_check_branch
          %186 = sbr.rel (%p184) target = $region36
        $region35: #{tpu_custom_call.1} parent=31 // pred_region
          %s187 = sand.u32 %s27, 1
          %s188 = scalar_lea.sflag [#allocation3], %s187
          %s189 = sand.u32 %s27, 1
          %s190 = smul.addr %s189, 64
          %s191 = scalar_lea.vmem [#allocation2], %s190
          %193 = vsyncadd %s188, 0
          %s194 = smul.addr %s17, 8
          %s195 = smul.addr %s194, 8
          %s196 = scalar_lea.hbm %s0, %s195
          %s197 = sshll.u32 %s196, 4
          %s198 = int_to_ptr.hbm [resolvable:$true] %s197
          %s199 = sshll.u32 %s191, 4
          %s200 = int_to_ptr.vmem [resolvable:$true] %s199
          %205 = dma.hbm_to_vmem [thread:$0]  %s198, 1024, %s200, %s188, 256, 256, 16
        $region36: #{tpu_custom_call.1} parent=31 // pred_fallthru
          _
      $region32: #{tpu_custom_call.1} parent=5 // pred_fallthru
        _
      %p206 = scmp.le.s32.totalorder 1, %s17
      %p207 = scmp.lt.s32.totalorder %s17, 3
      %p208 = pnand %p206, %p207
      %p209 = pneg %p208
      // Predicated region
      $region37: #{tpu_custom_call.1} parent=5 // pred_check
        _
      $region38: #{tpu_custom_call.1} parent=5 // pred_check_branch
        %211 = sbr.rel (%p208) target = $region40
      $region39: #{tpu_custom_call.1} parent=5 // pred_region
        %s212 = ssub.s32 %s17, 1
        %s213 = sand.u32 %s30, 1
        %s214 = scalar_lea.sflag [#allocation3], %s213
        %s215 = sand.u32 %s30, 1
        %s216 = smul.addr %s215, 64
        %s217 = scalar_lea.vmem [#allocation2], %s216
        // Predicated region
        $region41: #{tpu_custom_call.1} parent=39 // pred_check
          %p218 = pneg %p43
        $region42: #{tpu_custom_call.1} parent=39 // pred_check_branch
          %220 = sbr.rel (%p218) target = $region44
        $region43: #{tpu_custom_call.1} parent=39 // pred_region
          %222 = dma.done %s214, 1024
        $region44: #{tpu_custom_call.1} parent=39 // pred_fallthru
          _
        %s223 = sand.u32 %s30, 1
        %s224 = scalar_lea.sflag [#allocation3], %s223
        %s225 = sand.u32 %s30, 1
        %s226 = smul.addr %s225, 64
        %s227 = scalar_lea.vmem [#allocation2], %s226
        %p228 = pneg %p43
        %p229 = pneg %p40
        %p230 = pneg %p64
        %p231 = pneg %p61
        %p232 = pneg %p85
        %p233 = pneg %p82
        %p234 = pneg %p106
        %p235 = pneg %p103
        %p236 = pneg %p127
        %p237 = pneg %p124
        %p238 = pneg %p153
        %p239 = pneg %p150
        %s240 = sand.u32 %s140, 1
        %s241 = scalar_lea.sflag [#allocation4], %s240
        %s242 = sand.u32 %s140, 1
        %s243 = smul.addr %s242, 64
        %s244 = scalar_lea.vmem [#allocation5], %s243
        %v245 = vld [vmem:[%s217] sm:$0xff]
        %v246 = vld [vmem:[%s217 + $0x8] sm:$0xff]
        %v247 = vld [vmem:[%s217 + $0x10] sm:$0xff]
        %v248 = vld [vmem:[%s217 + $0x18] sm:$0xff]
        %v249 = vld [vmem:[%s217 + $0x20] sm:$0xff]
        %v250 = vld [vmem:[%s217 + $0x28] sm:$0xff]
        %v251 = vld [vmem:[%s217 + $0x30] sm:$0xff]
        %v252 = vld [vmem:[%s217 + $0x38] sm:$0xff]
        %253 = vmatpush.msra.mxu0 1.0
        %254 = vmatpush.msra.mxu0 1.0
        %255 = vmatpush.msra.mxu0 1.0
        %256 = vmatpush.msra.mxu0 1.0
        %257 = vmatpush.msra.mxu0 1.0
        %258 = vmatpush.msra.mxu0 1.0
        %259 = vmatpush.msra.mxu0 1.0
        %260 = vmatpush.msra.mxu0 1.0
        %261 = vmatpush.msra.mxu0 1.0
        %262 = vmatpush.msra.mxu0 1.0
        %263 = vmatpush.msra.mxu0 1.0
        %264 = vmatpush.msra.mxu0 1.0
        %265 = vmatpush.msra.mxu0 1.0
        %266 = vmatpush.msra.mxu0 1.0
        %267 = vmatpush.msra.mxu0 1.0
        %268 = vmatpush.msra.mxu0 1.0
        %269 = vmatmul.f32.gmra.mxu0 %v245
        %v270 = vpop.f32.mrf.mxu0
        %v271 = vadd.f32 0.0, %v270
        %272 = vmatmul.f32.gmra.mxu0 %v247
        %v273 = vpop.f32.mrf.mxu0
        %v274 = vadd.f32 0.0, %v273
        %275 = vmatmul.f32.gmra.mxu0 %v249
        %v276 = vpop.f32.mrf.mxu0
        %v277 = vadd.f32 0.0, %v276
        %278 = vmatmul.f32.gmra.mxu0 %v251
        %v279 = vpop.f32.mrf.mxu0
        %v280 = vadd.f32 0.0, %v279
        %281 = vdwg.mxu0
        %282 = vmatpush.msra.mxu0 1.0
        %283 = vmatpush.msra.mxu0 1.0
        %284 = vmatpush.msra.mxu0 1.0
        %285 = vmatpush.msra.mxu0 1.0
        %286 = vmatpush.msra.mxu0 1.0
        %287 = vmatpush.msra.mxu0 1.0
        %288 = vmatpush.msra.mxu0 1.0
        %289 = vmatpush.msra.mxu0 1.0
        %290 = vmatpush.msra.mxu0 1.0
        %291 = vmatpush.msra.mxu0 1.0
        %292 = vmatpush.msra.mxu0 1.0
        %293 = vmatpush.msra.mxu0 1.0
        %294 = vmatpush.msra.mxu0 1.0
        %295 = vmatpush.msra.mxu0 1.0
        %296 = vmatpush.msra.mxu0 1.0
        %297 = vmatpush.msra.mxu0 1.0
        %298 = vmatmul.f32.gmra.mxu0 %v246
        %v299 = vpop.f32.mrf.mxu0
        %v300 = vadd.f32 %v271, %v299
        %301 = vmatmul.f32.gmra.mxu0 %v248
        %v302 = vpop.f32.mrf.mxu0
        %v303 = vadd.f32 %v274, %v302
        %304 = vmatmul.f32.gmra.mxu0 %v250
        %v305 = vpop.f32.mrf.mxu0
        %v306 = vadd.f32 %v277, %v305
        %307 = vmatmul.f32.gmra.mxu0 %v252
        %v308 = vpop.f32.mrf.mxu0
        %v309 = vadd.f32 %v280, %v308
        %310 = vdwg.mxu0
        %v311 = vld [vmem:[%s1] sm:$0xff]
        %v312 = vld [vmem:[%s1 + $0x8] sm:$0xff]
        %v313 = vld [vmem:[%s1 + $0x10] sm:$0xff]
        %v314 = vld [vmem:[%s1 + $0x18] sm:$0xff]
        %v315 = vld [vmem:[%s2] sm:$0x1]
        %320 = vset.pattern.permute.xlu0 0
        %321 = vperm.xlu0 %320, %v300
        %v322 = vpop.permute.xlu0 %321
        %323 = vset.pattern.permute.xlu0 0
        %324 = vperm.xlu0 %323, %v303
        %v325 = vpop.permute.xlu0 %324
        %326 = vset.pattern.permute.xlu0 0
        %327 = vperm.xlu0 %326, %v306
        %v328 = vpop.permute.xlu0 %327
        %329 = vset.pattern.permute.xlu0 0
        %330 = vperm.xlu0 %329, %v309
        %v331 = vpop.permute.xlu0 %330
        %v332 = vlaneseq
        %v333 = vand.u32 %v332, 127
        %v334 = vperm.slane %v322, %v333
        %v335 = vadd.s32 %v333, 4294967288
        %v336 = vperm.slane %v325, %v335
        %vm337 = vcmask 130112
        %v338 = vsel %vm337, %v336, %v334
        %v339 = vadd.s32 %v333, 4294967280
        %v340 = vperm.slane %v328, %v339
        %vm341 = vcmask 195712
        %v342 = vsel %vm341, %v340, %v338
        %v343 = vadd.s32 %v333, 4294967272
        %v344 = vperm.slane %v331, %v343
        %vm345 = vcmask 261312
        %v346 = vsel %vm345, %v344, %v342
        %vm347 = vcmask 261120
        %v348 = vsel %vm347, %v346, 0
        %350 = vmatpush.msra.mxu0 0.0
        %351 = vmatpush.msra.mxu0 0.0
        %352 = vmatpush.msra.mxu0 0.0
        %353 = vmatpush.msra.mxu0 0.0
        %354 = vmatpush.msra.mxu0 0.0
        %355 = vmatpush.msra.mxu0 0.0
        %356 = vmatpush.msra.mxu0 0.0
        %357 = vmatpush.msra.mxu0 0.0
        %358 = vmatpush.msra.mxu0 0.0
        %359 = vmatpush.msra.mxu0 0.0
        %360 = vmatpush.msra.mxu0 0.0
        %361 = vmatpush.msra.mxu0 0.0
        %362 = vmatpush.msra.mxu0 %v314
        %363 = vmatpush.msra.mxu0 %v313
        %364 = vmatpush.msra.mxu0 %v312
        %365 = vmatpush.msra.mxu0 %v311
        %366 = vmatmul.f32.gmra.mxu0 %v348
        %v367 = vpop.f32.mrf.mxu0
        %v368 = vadd.f32 %v315, %v367
        %369 = vdwg.mxu0
        %v370 = vmax.f32 %v368, 0.0
        %v371 = vld [vmem:[%s3] sm:$0x3]
        %v372 = vld [vmem:[%s4] sm:$0x1]
        %vm373 = vcmask 15360
        %v375 = vsel %vm373, %v370, 0
        %vm377 = vcmask 1041408
        %v379 = vsel %vm377, %v371, 0
        %381 = vmatpush.msra.mxu0 0.0
        %382 = vmatpush.msra.mxu0 0.0
        %383 = vmatpush.msra.mxu0 0.0
        %384 = vmatpush.msra.mxu0 0.0
        %385 = vmatpush.msra.mxu0 0.0
        %386 = vmatpush.msra.mxu0 0.0
        %387 = vmatpush.msra.mxu0 0.0
        %388 = vmatpush.msra.mxu0 0.0
        %389 = vmatpush.msra.mxu0 0.0
        %390 = vmatpush.msra.mxu0 0.0
        %391 = vmatpush.msra.mxu0 0.0
        %392 = vmatpush.msra.mxu0 0.0
        %393 = vmatpush.msra.mxu0 0.0
        %394 = vmatpush.msra.mxu0 0.0
        %395 = vmatpush.msra.mxu0 0.0
        %396 = vmatpush.msra.mxu0 %v379
        %397 = vmatmul.f32.gmra.mxu0 %v375
        %v398 = vpop.f32.mrf.mxu0
        %v399 = vadd.f32 %v372, %v398
        %400 = vdwg.mxu0
        %v401 = vxor.u32 %v399, 2147483648
        %v402 = vmul.f32 %v401, 1.442695
        %v403 = vpow.pop %v402
        %v404 = vadd.f32 %v403, 1.0
        %v405 = vrcp.pop %v404
        %v406 = vmul.f32 %v404, %v405
        %v407 = vsub.f32 1.0, %v406
        %v408 = vmul.f32 %v405, %v407
        %v409 = vadd.f32 %v405, %v408
        %vm410 = vweird.f32 %v404
        %vm411 = vweird.f32 %v405
        %vm412 = vmor %vm410, %vm411
        %v413 = vsel %vm412, %v405, %v409
        %v414 = vand.u32 2147483647, %v404
        %vm415 = vcmp.eq.f32.partialorder %v414, 8.507059e+37
        %v416 = vand.u32 %v404, 2147483648
        %v417 = vor.u32 1.1754944e-38, %v416
        %v418 = vsel %vm415, %v417, %v413
        %v419 = vmul.f32 1.0, %v418
        %v420 = vperm.slane %v419, 0
        %v421 = vlaneseq
        %v422 = vshrl.u32 %v421, 7
        %424 = vset.pattern.permute.xlu0 %v422
        %425 = vperm.xlu0 %424, %v420
        %v426 = vpop.permute.xlu0 %425
        %v427 = vlaneseq
        %v428 = vshrl.u32 %v427, 7
        %v429 = vadd.s32 %v428, 8
        %430 = vset.pattern.permute.xlu0 %v429
        %431 = vperm.xlu0 %430, %v420
        %v432 = vpop.permute.xlu0 %431
        %v433 = vlaneseq
        %v434 = vshrl.u32 %v433, 7
        %v435 = vadd.s32 %v434, 16
        %436 = vset.pattern.permute.xlu0 %v435
        %437 = vperm.xlu0 %436, %v420
        %v438 = vpop.permute.xlu0 %437
        %v439 = vlaneseq
        %v440 = vshrl.u32 %v439, 7
        %v441 = vadd.s32 %v440, 24
        %442 = vset.pattern.permute.xlu0 %v441
        %443 = vperm.xlu0 %442, %v420
        %v444 = vpop.permute.xlu0 %443
        %v445 = vmul.f32 %v245, %v426
        %v446 = vmul.f32 %v246, %v426
        %v447 = vmul.f32 %v247, %v432
        %v448 = vmul.f32 %v248, %v432
        %v449 = vmul.f32 %v249, %v438
        %v450 = vmul.f32 %v250, %v438
        %v451 = vmul.f32 %v251, %v444
        %v452 = vmul.f32 %v252, %v444
        %453 = vst [vmem:[%s244] sm:$0xff] %v445
        %454 = vst [vmem:[%s244 + $0x8] sm:$0xff] %v446
        %455 = vst [vmem:[%s244 + $0x10] sm:$0xff] %v447
        %456 = vst [vmem:[%s244 + $0x18] sm:$0xff] %v448
        %457 = vst [vmem:[%s244 + $0x20] sm:$0xff] %v449
        %458 = vst [vmem:[%s244 + $0x28] sm:$0xff] %v450
        %459 = vst [vmem:[%s244 + $0x30] sm:$0xff] %v451
        %460 = vst [vmem:[%s244 + $0x38] sm:$0xff] %v452
        %s461 = sand.u32 %s140, 1
        %s462 = scalar_lea.sflag [#allocation4], %s461
        %s463 = sand.u32 %s140, 1
        %s464 = smul.addr %s463, 64
        %s465 = scalar_lea.vmem [#allocation5], %s464
        // Predicated region
        $region45: #{tpu_custom_call.1} parent=39 // pred_check
          %p466 = pneg %p150
        $region46: #{tpu_custom_call.1} parent=39 // pred_check_branch
          %468 = sbr.rel (%p466) target = $region48
        $region47: #{tpu_custom_call.1} parent=39 // pred_region
          %470 = vsyncadd %s462, 0
          %s471 = smul.addr %s22, 8
          %s472 = smul.addr %s471, 8
          %s473 = scalar_lea.hbm %s5, %s472
          %s474 = sshll.u32 %s465, 4
          %s475 = int_to_ptr.vmem [resolvable:$true] %s474
          %s476 = sshll.u32 %s473, 4
          %s477 = int_to_ptr.hbm [resolvable:$true] %s476
          %482 = dma.vmem_to_hbm [thread:$0]  %s475, 1024, %s477, %s462, 256, 256, 16
        $region48: #{tpu_custom_call.1} parent=39 // pred_fallthru
          _
      $region40: #{tpu_custom_call.1} parent=5 // pred_fallthru
        _
      %p483 = scmp.le.s32.totalorder 2, %s17
      // Predicated region
      $region49: #{tpu_custom_call.1} parent=5 // pred_check
        %p484 = pneg %p483
      $region50: #{tpu_custom_call.1} parent=5 // pred_check_branch
        %486 = sbr.rel (%p484) target = $region52
      $region51: #{tpu_custom_call.1} parent=5 // pred_region
        %s487 = ssub.s32 %s17, 2
        // Predicated region
        $region53: #{tpu_custom_call.1} parent=51 // pred_check
          %p488 = pneg %p156
        $region54: #{tpu_custom_call.1} parent=51 // pred_check_branch
          %490 = sbr.rel (%p488) target = $region56
        $region55: #{tpu_custom_call.1} parent=51 // pred_region
          %s491 = sand.u32 %s141, 1
          %s492 = scalar_lea.sflag [#allocation4], %s491
          %s493 = sand.u32 %s141, 1
          %s494 = smul.addr %s493, 64
          %s495 = scalar_lea.vmem [#allocation5], %s494
          %497 = dma.done %s492, 1024
        $region56: #{tpu_custom_call.1} parent=51 // pred_fallthru
          _
      $region52: #{tpu_custom_call.1} parent=5 // pred_fallthru
        _
    $region6: #{tpu_custom_call.1} parent=1 // loop_footer
      %s21 = sadd.s32 1, %s17
    $region7: #{tpu_custom_call.1} parent=1 // loop_footer_branch
      %16 = sbr.rel target = $region3
    $region8: #{tpu_custom_call.1} parent=1 // loop_exit
      _
    %498 = vsyncpa [#allocation3], 1
    %s499 = scalar_lea.sflag [#allocation3], 1
    %500 = vsyncpa %s499, 1
    %501 = vsyncpa [#allocation4], 1
    %s502 = scalar_lea.sflag [#allocation4], 1
    %503 = vsyncpa %s502, 1

</llo_original>
